<compile_context>
chip_gen: v5e
topology: v5e:2x2
jax: 0.10.0
libtpu: 0.0.40
codegen_flags: <defaults>
</compile_context>

<pallas_src>
import numpy as np
import jax
import jax.numpy as jnp
from jax.experimental import pallas as pl
from jax.experimental.pallas import tpu as pltpu

NUM_HEADS = 4
KEY_DIM = 8          # present in the torch __init__ but unused by nn.MultiheadAttention
EMBED_DIM = 32
FF_DIM = 64
SEQ_LEN = 8
BATCH = 2
EPS = 1e-6           # matches nn.LayerNorm(..., eps=1e-06)
HEAD_DIM = EMBED_DIM // NUM_HEADS
N_TOK = BATCH * SEQ_LEN            # flattened tokens (B*S)
HN = NUM_HEADS * N_TOK             # head-stacked rows (H*B*S)
NEG_BIG = -1e30                    # large finite mask bias (exp underflows to exactly 0)
LANES = 128

# ---- packed parameter-slab row layout ---------------------------------------
R_WQKV = 0                          # rows [0,32)    : Wqkv^T  lanes 0:96 (Q pre-scaled)
R_WO = EMBED_DIM                    # rows [32,64)   : Wo^T    lanes 0:32
R_W1 = 2 * EMBED_DIM                # rows [64,96)   : W1^T    lanes 0:64
R_W2 = 3 * EMBED_DIM                # rows [96,160)  : W2^T    lanes 0:32
R_BIAS = 3 * EMBED_DIM + FF_DIM     # rows [160,224) : mask bias (HN, HN) lanes 0:64
R_VEC = R_BIAS + HN                 # rows [224,232) : 8 packed 1-D params
SLAB_ROWS = R_VEC + 8               # 232 (multiple of 8)


def _layernorm(x, w, b):
    mu = jnp.mean(x, axis=-1, keepdims=True)
    xc = x - mu
    var = jnp.mean(xc * xc, axis=-1, keepdims=True)
    return xc * jax.lax.rsqrt(var + EPS) * w + b


def _build_mask_bias():
    """Static (HN, HN) bias: 0 where (same head, same batch, key<=query), else NEG_BIG."""
    r = np.arange(HN)
    c = np.arange(HN)
    rh, rn = r // N_TOK, r % N_TOK          # head / flat-token of the query row
    ch, cn = c // N_TOK, c % N_TOK          # head / flat-token of the key column
    rb, ri = rn // SEQ_LEN, rn % SEQ_LEN    # batch / position of the query
    cb, cj = cn // SEQ_LEN, cn % SEQ_LEN    # batch / position of the key
    masked = ((rh[:, None] != ch[None, :])
              | (rb[:, None] != cb[None, :])
              | (cj[None, :] > ri[:, None]))
    return np.where(masked, np.float32(NEG_BIG), np.float32(0.0)).astype(np.float32)


def transformer_block_kernel(x_ref, w_ref, out_ref):
    E, H, hd, F, N = EMBED_DIM, NUM_HEADS, HEAD_DIM, FF_DIM, N_TOK

    x = x_ref[...]                                    # (N, E)

    # --- packed 1-D params (single slab -> static row/lane slices) ----------
    bqkv = w_ref[R_VEC + 0:R_VEC + 1, :]              # (1, 128), Q part pre-scaled, zero-padded
    bo = w_ref[R_VEC + 1:R_VEC + 2, 0:E]
    ln1w = w_ref[R_VEC + 2:R_VEC + 3, 0:E]
    ln1b = w_ref[R_VEC + 3:R_VEC + 4, 0:E]
    b1 = w_ref[R_VEC + 4:R_VEC + 5, 0:F]
    b2 = w_ref[R_VEC + 5:R_VEC + 6, 0:E]
    ln2w = w_ref[R_VEC + 6:R_VEC + 7, 0:E]
    ln2b = w_ref[R_VEC + 7:R_VEC + 8, 0:E]

    # --- fused QKV projection (full-128-lane weight read; pad lanes are zero)
    qkv = jnp.dot(x, w_ref[R_WQKV:R_WQKV + E, :],
                  preferred_element_type=jnp.float32) + bqkv    # (N, 128)
    q = qkv[:, 0:E]
    k = qkv[:, E:2 * E]
    v = qkv[:, 2 * E:3 * E]

    # --- stack heads along the sublane axis: (H*N, hd) -----------------------
    q_s = jnp.concatenate([q[:, h * hd:(h + 1) * hd] for h in range(H)], axis=0)
    k_s = jnp.concatenate([k[:, h * hd:(h + 1) * hd] for h in range(H)], axis=0)
    v_s = jnp.concatenate([v[:, h * hd:(h + 1) * hd] for h in range(H)], axis=0)

    # --- all head scores with ONE matmul (contract last dims: q @ k^T) -------
    s = jax.lax.dot_general(q_s, k_s, (((1,), (1,)), ((), ())),
                            preferred_element_type=jnp.float32)  # (HN, HN)
    # static block-diagonal causal bias (off-head / off-batch / future -> -1e30)
    s = s + w_ref[R_BIAS:R_BIAS + HN, 0:HN]

    # --- one softmax for every head (masked entries underflow to exactly 0) --
    m = jnp.max(s, axis=-1, keepdims=True)
    e = jnp.exp(s - m)
    denom = jnp.sum(e, axis=-1, keepdims=True)
    p = e * pl.reciprocal(denom, approx=True)                    # (HN, HN), EUP divide

    # --- all head contexts with ONE matmul, then un-stack to (N, E) ----------
    ctx_s = jnp.dot(p, v_s, preferred_element_type=jnp.float32)  # (HN, hd)
    o_cat = jnp.concatenate([ctx_s[h * N:(h + 1) * N, :] for h in range(H)],
                            axis=1)                              # (N, E)

    attn_out = jnp.dot(o_cat, w_ref[R_WO:R_WO + E, 0:E],
                       preferred_element_type=jnp.float32) + bo
    # TODO(synk): attention-prob dropout and F.dropout(ffn2) are stochastic
    # (train mode); implemented as identity (inference/eval semantics).

    out1 = _layernorm(x + attn_out, ln1w, ln1b)

    h1 = jnp.maximum(jnp.dot(out1, w_ref[R_W1:R_W1 + E, 0:F],
                             preferred_element_type=jnp.float32) + b1, 0.0)
    h2 = jnp.dot(h1, w_ref[R_W2:R_W2 + F, 0:E],
                 preferred_element_type=jnp.float32) + b2
    out2 = _layernorm(out1 + h2, ln2w, ln2b)

    # --- head-averaged attention probs: sum of per-head diagonal blocks ------
    pav = p[0:N, 0:N]
    for h in range(1, H):
        pav = pav + p[h * N:(h + 1) * N, h * N:(h + 1) * N]
    pav = pav * (1.0 / H)

    # --- single lane-dense (N, 128) store: [out | attn_w | zero pad] ---------
    pad = jnp.zeros((N, LANES - E - N), jnp.float32)
    out_ref[...] = jnp.concatenate([out2, pav, pad], axis=1)


def transformer_block(x, params):
    B, S, E = x.shape
    H, hd, F = NUM_HEADS, HEAD_DIM, FF_DIM
    N = B * S
    wqkv, bqkv, wo, bo, ln1w, ln1b, w1, b1, w2, b2, ln2w, ln2b = params

    # Host-side preconditioning (constants, transformed once):
    #   fold 1/sqrt(head_dim) into the Q rows of the QKV projection,
    #   pre-transpose every weight, and pack weights + static mask bias +
    #   1-D params into ONE zero-padded (232, 128) slab -> a single weight DMA.
    scale = 1.0 / float(np.sqrt(hd))
    wqkv_s = jnp.concatenate([wqkv[:E] * scale, wqkv[E:]], axis=0)
    bqkv_s = jnp.concatenate([bqkv[:E] * scale, bqkv[E:]], axis=0)

    slab = jnp.zeros((SLAB_ROWS, LANES), jnp.float32)
    slab = slab.at[R_WQKV:R_WQKV + E, 0:3 * E].set(wqkv_s.T)
    slab = slab.at[R_WO:R_WO + E, 0:E].set(wo.T)
    slab = slab.at[R_W1:R_W1 + E, 0:F].set(w1.T)
    slab = slab.at[R_W2:R_W2 + F, 0:E].set(w2.T)
    slab = slab.at[R_BIAS:R_BIAS + H * N, 0:H * N].set(jnp.asarray(_build_mask_bias()))
    for i, vec in enumerate((bqkv_s, bo, ln1w, ln1b, b1, b2, ln2w, ln2b)):
        slab = slab.at[R_VEC + i, 0:vec.shape[0]].set(vec)

    x_flat = x.reshape(N, E)

    vmem = pl.BlockSpec(memory_space=pltpu.MemorySpace.VMEM)
    out_slab = pl.pallas_call(
        transformer_block_kernel,
        out_shape=jax.ShapeDtypeStruct((N, LANES), jnp.float32),
        in_specs=[vmem, vmem],
        out_specs=vmem,
    )(x_flat, slab)

    out = out_slab[:, 0:E].reshape(B, S, E)
    # extract the per-batch diagonal (S, S) blocks of the (B*S, B*S) slab
    full = out_slab[:, E:E + N].reshape(B, S, B, S)
    bidx = jnp.arange(B)
    attn_w = full[bidx, :, bidx, :]                # (B, S, S)
    return out, attn_w


def reference(x, params):
    """Pure-JAX reference reproducing torch semantics (eval / no dropout)."""
    wqkv, bqkv, wo, bo, ln1w, ln1b, w1, b1, w2, b2, ln2w, ln2b = params
    B, S, E = x.shape
    H, hd = NUM_HEADS, E // NUM_HEADS
    qkv = x @ wqkv.T + bqkv
    q, k, v = jnp.split(qkv, 3, axis=-1)
    q = q.reshape(B, S, H, hd).transpose(0, 2, 1, 3)
    k = k.reshape(B, S, H, hd).transpose(0, 2, 1, 3)
    v = v.reshape(B, S, H, hd).transpose(0, 2, 1, 3)
    scores = (q @ jnp.swapaxes(k, -1, -2)) / jnp.sqrt(jnp.float32(hd))
    mask = jnp.triu(jnp.ones((S, S), bool), 1)
    scores = jnp.where(mask, -jnp.inf, scores)
    p = jax.nn.softmax(scores, axis=-1)
    o = (p @ v).transpose(0, 2, 1, 3).reshape(B, S, E)
    attn_out = o @ wo.T + bo

    def ln(z, w, b):
        mu = z.mean(-1, keepdims=True)
        var = ((z - mu) ** 2).mean(-1, keepdims=True)
        return (z - mu) / jnp.sqrt(var + EPS) * w + b

    out1 = ln(x + attn_out, ln1w, ln1b)
    h1 = jax.nn.relu(out1 @ w1.T + b1)
    h2 = h1 @ w2.T + b2
    return ln(out1 + h2, ln2w, ln2b), p.mean(axis=1)


def init_params(key):
    E, F = EMBED_DIM, FF_DIM
    ks = jax.random.split(key, 8)
    f32 = jnp.float32
    wqkv = 0.02 * jax.random.normal(ks[0], (3 * E, E), f32)
    bqkv = 0.02 * jax.random.normal(ks[1], (3 * E,), f32)
    wo = 0.02 * jax.random.normal(ks[2], (E, E), f32)
    bo = 0.02 * jax.random.normal(ks[3], (E,), f32)
    ln1w = jnp.ones((E,), f32)
    ln1b = jnp.zeros((E,), f32)
    w1 = 0.02 * jax.random.normal(ks[4], (F, E), f32)
    b1 = 0.02 * jax.random.normal(ks[5], (F,), f32)
    w2 = 0.02 * jax.random.normal(ks[6], (E, F), f32)
    b2 = 0.02 * jax.random.normal(ks[7], (E,), f32)
    ln2w = jnp.ones((E,), f32)
    ln2b = jnp.zeros((E,), f32)
    return (wqkv, bqkv, wo, bo, ln1w, ln1b, w1, b1, w2, b2, ln2w, ln2b)


if __name__ == "__main__":
    key = jax.random.PRNGKey(0)
    kx, kp = jax.random.split(key)
    x = jax.random.normal(kx, (BATCH, SEQ_LEN, EMBED_DIM), jnp.float32)
    params = init_params(kp)

    out, attn_w = transformer_block(x, params)
    out = jax.block_until_ready(out)
    attn_w = jax.block_until_ready(attn_w)

    ref_out, ref_attn = reference(x, params)
    assert out.shape == (BATCH, SEQ_LEN, EMBED_DIM)
    assert attn_w.shape == (BATCH, SEQ_LEN, SEQ_LEN)
    # tolerances loosened from 1e-5 because of pl.reciprocal(approx=True)
    np.testing.assert_allclose(np.asarray(out), np.asarray(ref_out),
                               rtol=2e-3, atol=2e-3)
    np.testing.assert_allclose(np.asarray(attn_w), np.asarray(ref_attn),
                               rtol=2e-3, atol=2e-3)
    print("KERNEL_OK")
</pallas_src>

<mosaic_0001>
module attributes {stable_mosaic.version = 11 : i64} {
  func.func @transformer_block_kernel(%arg0: memref<16x32xf32, #tpu.memory_space<vmem>>, %arg1: memref<232x128xf32, #tpu.memory_space<vmem>>, %arg2: memref<16x128xf32, #tpu.memory_space<vmem>>) attributes {dimension_semantics = [], scalar_prefetch = 0 : i64, scratch_operands = 0 : i64, tpu.core_type = #tpu.core_type<tc>} {
    %c0 = arith.constant 0 : index
    %c0_0 = arith.constant 0 : index
    %0 = vector.load %arg0[%c0, %c0_0] : memref<16x32xf32, #tpu.memory_space<vmem>>, vector<16x32xf32>
    %c224 = arith.constant 224 : index
    %c0_1 = arith.constant 0 : index
    %1 = vector.load %arg1[%c224, %c0_1] : memref<232x128xf32, #tpu.memory_space<vmem>>, vector<1x128xf32>
    %c225 = arith.constant 225 : index
    %c0_2 = arith.constant 0 : index
    %2 = vector.load %arg1[%c225, %c0_2] : memref<232x128xf32, #tpu.memory_space<vmem>>, vector<1x32xf32>
    %c226 = arith.constant 226 : index
    %c0_3 = arith.constant 0 : index
    %3 = vector.load %arg1[%c226, %c0_3] : memref<232x128xf32, #tpu.memory_space<vmem>>, vector<1x32xf32>
    %c227 = arith.constant 227 : index
    %c0_4 = arith.constant 0 : index
    %4 = vector.load %arg1[%c227, %c0_4] : memref<232x128xf32, #tpu.memory_space<vmem>>, vector<1x32xf32>
    %c228 = arith.constant 228 : index
    %c0_5 = arith.constant 0 : index
    %5 = vector.load %arg1[%c228, %c0_5] : memref<232x128xf32, #tpu.memory_space<vmem>>, vector<1x64xf32>
    %c229 = arith.constant 229 : index
    %c0_6 = arith.constant 0 : index
    %6 = vector.load %arg1[%c229, %c0_6] : memref<232x128xf32, #tpu.memory_space<vmem>>, vector<1x32xf32>
    %c230 = arith.constant 230 : index
    %c0_7 = arith.constant 0 : index
    %7 = vector.load %arg1[%c230, %c0_7] : memref<232x128xf32, #tpu.memory_space<vmem>>, vector<1x32xf32>
    %c231 = arith.constant 231 : index
    %c0_8 = arith.constant 0 : index
    %8 = vector.load %arg1[%c231, %c0_8] : memref<232x128xf32, #tpu.memory_space<vmem>>, vector<1x32xf32>
    %c0_9 = arith.constant 0 : index
    %c0_10 = arith.constant 0 : index
    %9 = vector.load %arg1[%c0_9, %c0_10] : memref<232x128xf32, #tpu.memory_space<vmem>>, vector<32x128xf32>
    %cst = arith.constant dense<0.000000e+00> : vector<16x128xf32>
    %10 = tpu.matmul %0, %9, %cst {dimension_numbers = #tpu.dot_dimension_numbers<[1], [0], [0], [1], [0, 0, 1, 1], [], []>} : vector<16x32xf32>, vector<32x128xf32>, vector<16x128xf32> -> vector<16x128xf32>
    %11 = vector.broadcast %1 : vector<1x128xf32> to vector<16x128xf32>
    %12 = arith.addf %10, %11 : vector<16x128xf32>
    %13 = vector.extract_strided_slice %12 {offsets = [0, 0], sizes = [16, 32], strides = [1, 1]} : vector<16x128xf32> to vector<16x32xf32>
    %14 = vector.extract_strided_slice %12 {offsets = [0, 32], sizes = [16, 32], strides = [1, 1]} : vector<16x128xf32> to vector<16x32xf32>
    %15 = vector.extract_strided_slice %12 {offsets = [0, 64], sizes = [16, 32], strides = [1, 1]} : vector<16x128xf32> to vector<16x32xf32>
    %16 = vector.extract_strided_slice %13 {offsets = [0, 0], sizes = [16, 8], strides = [1, 1]} : vector<16x32xf32> to vector<16x8xf32>
    %17 = vector.extract_strided_slice %13 {offsets = [0, 8], sizes = [16, 8], strides = [1, 1]} : vector<16x32xf32> to vector<16x8xf32>
    %18 = vector.extract_strided_slice %13 {offsets = [0, 16], sizes = [16, 8], strides = [1, 1]} : vector<16x32xf32> to vector<16x8xf32>
    %19 = vector.extract_strided_slice %13 {offsets = [0, 24], sizes = [16, 8], strides = [1, 1]} : vector<16x32xf32> to vector<16x8xf32>
    %20 = tpu.concatenate %16, %17, %18, %19 in 0 : vector<16x8xf32>, vector<16x8xf32>, vector<16x8xf32>, vector<16x8xf32> -> vector<64x8xf32>
    %21 = vector.extract_strided_slice %14 {offsets = [0, 0], sizes = [16, 8], strides = [1, 1]} : vector<16x32xf32> to vector<16x8xf32>
    %22 = vector.extract_strided_slice %14 {offsets = [0, 8], sizes = [16, 8], strides = [1, 1]} : vector<16x32xf32> to vector<16x8xf32>
    %23 = vector.extract_strided_slice %14 {offsets = [0, 16], sizes = [16, 8], strides = [1, 1]} : vector<16x32xf32> to vector<16x8xf32>
    %24 = vector.extract_strided_slice %14 {offsets = [0, 24], sizes = [16, 8], strides = [1, 1]} : vector<16x32xf32> to vector<16x8xf32>
    %25 = tpu.concatenate %21, %22, %23, %24 in 0 : vector<16x8xf32>, vector<16x8xf32>, vector<16x8xf32>, vector<16x8xf32> -> vector<64x8xf32>
    %26 = vector.extract_strided_slice %15 {offsets = [0, 0], sizes = [16, 8], strides = [1, 1]} : vector<16x32xf32> to vector<16x8xf32>
    %27 = vector.extract_strided_slice %15 {offsets = [0, 8], sizes = [16, 8], strides = [1, 1]} : vector<16x32xf32> to vector<16x8xf32>
    %28 = vector.extract_strided_slice %15 {offsets = [0, 16], sizes = [16, 8], strides = [1, 1]} : vector<16x32xf32> to vector<16x8xf32>
    %29 = vector.extract_strided_slice %15 {offsets = [0, 24], sizes = [16, 8], strides = [1, 1]} : vector<16x32xf32> to vector<16x8xf32>
    %30 = tpu.concatenate %26, %27, %28, %29 in 0 : vector<16x8xf32>, vector<16x8xf32>, vector<16x8xf32>, vector<16x8xf32> -> vector<64x8xf32>
    %cst_11 = arith.constant dense<0.000000e+00> : vector<64x64xf32>
    %31 = tpu.matmul %20, %25, %cst_11 {dimension_numbers = #tpu.dot_dimension_numbers<[1], [1], [0], [0], [0, 0, 1, 0], [], []>} : vector<64x8xf32>, vector<64x8xf32>, vector<64x64xf32> -> vector<64x64xf32>
    %c160 = arith.constant 160 : index
    %c0_12 = arith.constant 0 : index
    %32 = vector.load %arg1[%c160, %c0_12] : memref<232x128xf32, #tpu.memory_space<vmem>>, vector<64x64xf32>
    %33 = arith.addf %31, %32 : vector<64x64xf32>
    %cst_13 = arith.constant dense<0xFF800000> : vector<64xf32>
    %34 = vector.multi_reduction <maximumf>, %33, %cst_13 [1] : vector<64x64xf32> to vector<64xf32>
    %35 = vector.shape_cast %34 : vector<64xf32> to vector<64x1xf32>
    %36 = vector.broadcast %35 : vector<64x1xf32> to vector<64x64xf32>
    %37 = arith.subf %33, %36 : vector<64x64xf32>
    %38 = math.exp %37 : vector<64x64xf32>
    %cst_14 = arith.constant dense<0.000000e+00> : vector<64xf32>
    %39 = vector.multi_reduction <add>, %38, %cst_14 [1] : vector<64x64xf32> to vector<64xf32>
    %40 = vector.shape_cast %39 : vector<64xf32> to vector<64x1xf32>
    %41 = tpu.reciprocal %40 {approx = true} : vector<64x1xf32> -> vector<64x1xf32>
    %42 = vector.broadcast %41 : vector<64x1xf32> to vector<64x64xf32>
    %43 = arith.mulf %38, %42 : vector<64x64xf32>
    %cst_15 = arith.constant dense<0.000000e+00> : vector<64x8xf32>
    %44 = tpu.matmul %43, %30, %cst_15 {dimension_numbers = #tpu.dot_dimension_numbers<[1], [0], [0], [1], [0, 0, 1, 1], [], []>} : vector<64x64xf32>, vector<64x8xf32>, vector<64x8xf32> -> vector<64x8xf32>
    %45 = vector.extract_strided_slice %44 {offsets = [0, 0], sizes = [16, 8], strides = [1, 1]} : vector<64x8xf32> to vector<16x8xf32>
    %46 = vector.extract_strided_slice %44 {offsets = [16, 0], sizes = [16, 8], strides = [1, 1]} : vector<64x8xf32> to vector<16x8xf32>
    %47 = vector.extract_strided_slice %44 {offsets = [32, 0], sizes = [16, 8], strides = [1, 1]} : vector<64x8xf32> to vector<16x8xf32>
    %48 = vector.extract_strided_slice %44 {offsets = [48, 0], sizes = [16, 8], strides = [1, 1]} : vector<64x8xf32> to vector<16x8xf32>
    %49 = tpu.concatenate %45, %46, %47, %48 in 1 : vector<16x8xf32>, vector<16x8xf32>, vector<16x8xf32>, vector<16x8xf32> -> vector<16x32xf32>
    %c32 = arith.constant 32 : index
    %c0_16 = arith.constant 0 : index
    %50 = vector.load %arg1[%c32, %c0_16] : memref<232x128xf32, #tpu.memory_space<vmem>>, vector<32x32xf32>
    %cst_17 = arith.constant dense<0.000000e+00> : vector<16x32xf32>
    %51 = tpu.matmul %49, %50, %cst_17 {dimension_numbers = #tpu.dot_dimension_numbers<[1], [0], [0], [1], [0, 0, 1, 1], [], []>} : vector<16x32xf32>, vector<32x32xf32>, vector<16x32xf32> -> vector<16x32xf32>
    %52 = vector.broadcast %2 : vector<1x32xf32> to vector<16x32xf32>
    %53 = arith.addf %51, %52 : vector<16x32xf32>
    %54 = arith.addf %0, %53 : vector<16x32xf32>
    %cst_18 = arith.constant dense<0.000000e+00> : vector<16xf32>
    %55 = vector.multi_reduction <add>, %54, %cst_18 [1] : vector<16x32xf32> to vector<16xf32>
    %56 = vector.shape_cast %55 : vector<16xf32> to vector<16x1xf32>
    %cst_19 = arith.constant 3.200000e+01 : f32
    %57 = vector.broadcast %cst_19 : f32 to vector<16x1xf32>
    %58 = arith.divf %56, %57 : vector<16x1xf32>
    %59 = vector.broadcast %58 : vector<16x1xf32> to vector<16x32xf32>
    %60 = arith.subf %54, %59 : vector<16x32xf32>
    %61 = arith.mulf %60, %60 : vector<16x32xf32>
    %cst_20 = arith.constant dense<0.000000e+00> : vector<16xf32>
    %62 = vector.multi_reduction <add>, %61, %cst_20 [1] : vector<16x32xf32> to vector<16xf32>
    %63 = vector.shape_cast %62 : vector<16xf32> to vector<16x1xf32>
    %cst_21 = arith.constant 3.200000e+01 : f32
    %64 = vector.broadcast %cst_21 : f32 to vector<16x1xf32>
    %65 = arith.divf %63, %64 : vector<16x1xf32>
    %cst_22 = arith.constant 9.99999997E-7 : f32
    %66 = vector.broadcast %cst_22 : f32 to vector<16x1xf32>
    %67 = arith.addf %65, %66 : vector<16x1xf32>
    %68 = math.rsqrt %67 : vector<16x1xf32>
    %69 = vector.broadcast %68 : vector<16x1xf32> to vector<16x32xf32>
    %70 = arith.mulf %60, %69 : vector<16x32xf32>
    %71 = vector.broadcast %3 : vector<1x32xf32> to vector<16x32xf32>
    %72 = arith.mulf %70, %71 : vector<16x32xf32>
    %73 = vector.broadcast %4 : vector<1x32xf32> to vector<16x32xf32>
    %74 = arith.addf %72, %73 : vector<16x32xf32>
    %c64 = arith.constant 64 : index
    %c0_23 = arith.constant 0 : index
    %75 = vector.load %arg1[%c64, %c0_23] : memref<232x128xf32, #tpu.memory_space<vmem>>, vector<32x64xf32>
    %cst_24 = arith.constant dense<0.000000e+00> : vector<16x64xf32>
    %76 = tpu.matmul %74, %75, %cst_24 {dimension_numbers = #tpu.dot_dimension_numbers<[1], [0], [0], [1], [0, 0, 1, 1], [], []>} : vector<16x32xf32>, vector<32x64xf32>, vector<16x64xf32> -> vector<16x64xf32>
    %77 = vector.broadcast %5 : vector<1x64xf32> to vector<16x64xf32>
    %78 = arith.addf %76, %77 : vector<16x64xf32>
    %cst_25 = arith.constant 0.000000e+00 : f32
    %79 = vector.broadcast %cst_25 : f32 to vector<16x64xf32>
    %80 = arith.maximumf %78, %79 : vector<16x64xf32>
    %c96 = arith.constant 96 : index
    %c0_26 = arith.constant 0 : index
    %81 = vector.load %arg1[%c96, %c0_26] : memref<232x128xf32, #tpu.memory_space<vmem>>, vector<64x32xf32>
    %cst_27 = arith.constant dense<0.000000e+00> : vector<16x32xf32>
    %82 = tpu.matmul %80, %81, %cst_27 {dimension_numbers = #tpu.dot_dimension_numbers<[1], [0], [0], [1], [0, 0, 1, 1], [], []>} : vector<16x64xf32>, vector<64x32xf32>, vector<16x32xf32> -> vector<16x32xf32>
    %83 = vector.broadcast %6 : vector<1x32xf32> to vector<16x32xf32>
    %84 = arith.addf %82, %83 : vector<16x32xf32>
    %85 = arith.addf %74, %84 : vector<16x32xf32>
    %cst_28 = arith.constant dense<0.000000e+00> : vector<16xf32>
    %86 = vector.multi_reduction <add>, %85, %cst_28 [1] : vector<16x32xf32> to vector<16xf32>
    %87 = vector.shape_cast %86 : vector<16xf32> to vector<16x1xf32>
    %cst_29 = arith.constant 3.200000e+01 : f32
    %88 = vector.broadcast %cst_29 : f32 to vector<16x1xf32>
    %89 = arith.divf %87, %88 : vector<16x1xf32>
    %90 = vector.broadcast %89 : vector<16x1xf32> to vector<16x32xf32>
    %91 = arith.subf %85, %90 : vector<16x32xf32>
    %92 = arith.mulf %91, %91 : vector<16x32xf32>
    %cst_30 = arith.constant dense<0.000000e+00> : vector<16xf32>
    %93 = vector.multi_reduction <add>, %92, %cst_30 [1] : vector<16x32xf32> to vector<16xf32>
    %94 = vector.shape_cast %93 : vector<16xf32> to vector<16x1xf32>
    %cst_31 = arith.constant 3.200000e+01 : f32
    %95 = vector.broadcast %cst_31 : f32 to vector<16x1xf32>
    %96 = arith.divf %94, %95 : vector<16x1xf32>
    %cst_32 = arith.constant 9.99999997E-7 : f32
    %97 = vector.broadcast %cst_32 : f32 to vector<16x1xf32>
    %98 = arith.addf %96, %97 : vector<16x1xf32>
    %99 = math.rsqrt %98 : vector<16x1xf32>
    %100 = vector.broadcast %99 : vector<16x1xf32> to vector<16x32xf32>
    %101 = arith.mulf %91, %100 : vector<16x32xf32>
    %102 = vector.broadcast %7 : vector<1x32xf32> to vector<16x32xf32>
    %103 = arith.mulf %101, %102 : vector<16x32xf32>
    %104 = vector.broadcast %8 : vector<1x32xf32> to vector<16x32xf32>
    %105 = arith.addf %103, %104 : vector<16x32xf32>
    %106 = vector.extract_strided_slice %43 {offsets = [0, 0], sizes = [16, 16], strides = [1, 1]} : vector<64x64xf32> to vector<16x16xf32>
    %107 = vector.extract_strided_slice %43 {offsets = [16, 16], sizes = [16, 16], strides = [1, 1]} : vector<64x64xf32> to vector<16x16xf32>
    %108 = arith.addf %106, %107 : vector<16x16xf32>
    %109 = vector.extract_strided_slice %43 {offsets = [32, 32], sizes = [16, 16], strides = [1, 1]} : vector<64x64xf32> to vector<16x16xf32>
    %110 = arith.addf %108, %109 : vector<16x16xf32>
    %111 = vector.extract_strided_slice %43 {offsets = [48, 48], sizes = [16, 16], strides = [1, 1]} : vector<64x64xf32> to vector<16x16xf32>
    %112 = arith.addf %110, %111 : vector<16x16xf32>
    %cst_33 = arith.constant 2.500000e-01 : f32
    %113 = vector.broadcast %cst_33 : f32 to vector<16x16xf32>
    %114 = arith.mulf %112, %113 : vector<16x16xf32>
    %cst_34 = arith.constant 0.000000e+00 : f32
    %115 = vector.broadcast %cst_34 : f32 to vector<16x80xf32>
    %116 = tpu.concatenate %105, %114, %115 in 1 : vector<16x32xf32>, vector<16x16xf32>, vector<16x80xf32> -> vector<16x128xf32>
    %c0_35 = arith.constant 0 : index
    %c0_36 = arith.constant 0 : index
    %117 = vector.load %arg2[%c0_35, %c0_36] : memref<16x128xf32, #tpu.memory_space<vmem>>, vector<16x128xf32>
    tpu.vector_store %arg2[%c0_35, %c0_36], %116 {strides = array<i32>} : memref<16x128xf32, #tpu.memory_space<vmem>>, vector<16x128xf32>,
    return
  }
}

</mosaic_0001>

<llo_original>
// kernel: tpu_custom_call.1
$region0: #{tpu_custom_call.1}
  #allocation0 [shape = 'u32[]', space=smem, size = 0x4, offset = 0x4, fixed_abs, tag = 'smem constant byte address 0x4 - core index']
  #allocation1 [shape = 'u32[72,128]{1,0:T(1,128)}', space=vmem, size = 0x9000, scoped, tag = 'internal scratch']
  %s0 = inlined_call_operand.hbm [shape: f32[16,32], index: 0, kind: input, shape index: {}]
  %s1 = inlined_call_operand.hbm [shape: f32[232,128], index: 1, kind: input, shape index: {}]
  %s2 = inlined_call_operand.hbm [shape: f32[16,128], index: 2, kind: output, shape index: {}]
  %s3 = sld [smem:[#allocation0]]
  $region26: #{tpu_custom_call.1} parent=0
    _
  %s5 = ssub.s32 1, %s3
  %s6 = scalar_select 0, %s5, %s3
  $region1: #{tpu_custom_call.1} parent=0
    #allocation2 [shape = 'u8[8192]{0}', space=vmem, size = 0x2000, scoped, tag = 'input window, operand 0, single buffered']
    #allocation3 [shape = 's32[1]{0}', space=sflag, size = 0x4, scoped, tag = 'scoped memory for tpu_custom_call.1']
    #allocation4 [shape = 's32[1]{0}', space=sflag, size = 0x4, scoped, tag = 'scoped memory for tpu_custom_call.1']
    #allocation5 [shape = 'u8[118784]{0}', space=vmem, size = 0x1d000, scoped, tag = 'input window, operand 1, single buffered']
    #allocation6 [shape = 's32[1]{0}', space=sflag, size = 0x4, scoped, tag = 'scoped memory for tpu_custom_call.1']
    #allocation7 [shape = 'u8[8192]{0}', space=vmem, size = 0x2000, scoped, tag = 'output window, operand 0, single buffered']
    %7 = vsyncpa [#allocation3], 0
    %8 = vsyncpa [#allocation6], 0
    %9 = vsyncpa [#allocation4], 0
    // Predicated region
    $region2: #{tpu_custom_call.1} parent=1 // pred_check
      _
    $region3: #{tpu_custom_call.1} parent=1 // pred_check_branch
      %11 = sbr.rel (0) target = $region5
    $region4: #{tpu_custom_call.1} parent=1 // pred_region
      %13 = vsyncadd [#allocation3], 0
      %s14 = sshll.u32 %s0, 4
      %s15 = int_to_ptr.hbm [resolvable:$true] %s14
      %s16 = sshll.u32 [#allocation2], 4
      %s17 = int_to_ptr.vmem [resolvable:$true] %s16
      %22 = dma.hbm_to_vmem [thread:$0]  %s15, 256, %s17, [#allocation3], 128, 128, 8
    $region5: #{tpu_custom_call.1} parent=1 // pred_fallthru
      _
    // Predicated region
    $region6: #{tpu_custom_call.1} parent=1 // pred_check
      _
    $region7: #{tpu_custom_call.1} parent=1 // pred_check_branch
      %24 = sbr.rel (0) target = $region9
    $region8: #{tpu_custom_call.1} parent=1 // pred_region
      %26 = vsyncadd [#allocation6], 0
      %s27 = sshll.u32 %s1, 4
      %s28 = int_to_ptr.hbm [resolvable:$true] %s27
      %s29 = sshll.u32 [#allocation5], 4
      %s30 = int_to_ptr.vmem [resolvable:$true] %s29
      %35 = dma.hbm_to_vmem [thread:$0]  %s28, 3712, %s30, [#allocation6], 128, 128, 8
    $region9: #{tpu_custom_call.1} parent=1 // pred_fallthru
      _
    // Predicated region
    $region10: #{tpu_custom_call.1} parent=1 // pred_check
      _
    $region11: #{tpu_custom_call.1} parent=1 // pred_check_branch
      %37 = sbr.rel (0) target = $region13
    $region12: #{tpu_custom_call.1} parent=1 // pred_region
      %39 = dma.done [#allocation3], 256
    $region13: #{tpu_custom_call.1} parent=1 // pred_fallthru
      _
    // Predicated region
    $region14: #{tpu_custom_call.1} parent=1 // pred_check
      _
    $region15: #{tpu_custom_call.1} parent=1 // pred_check_branch
      %41 = sbr.rel (0) target = $region17
    $region16: #{tpu_custom_call.1} parent=1 // pred_region
      %43 = dma.done [#allocation6], 3712
    $region17: #{tpu_custom_call.1} parent=1 // pred_fallthru
      _
    %v44 = vld [vmem:[#allocation2] sm:$0xff]
    %v45 = vld [vmem:[#allocation2 + $0x8] sm:$0xff]
    %v46 = vld [vmem:[#allocation5 + $0xe0] sm:$0x1]
    %v47 = vld [vmem:[#allocation5 + $0xe1] sm:$0x1]
    %v48 = vld [vmem:[#allocation5 + $0xe2] sm:$0x1]
    %v49 = vld [vmem:[#allocation5 + $0xe3] sm:$0x1]
    %v50 = vld [vmem:[#allocation5 + $0xe4] sm:$0x1]
    %v51 = vld [vmem:[#allocation5 + $0xe5] sm:$0x1]
    %v52 = vld [vmem:[#allocation5 + $0xe6] sm:$0x1]
    %v53 = vld [vmem:[#allocation5 + $0xe7] sm:$0x1]
    %v54 = vld [vmem:[#allocation5] sm:$0xff]
    %v55 = vld [vmem:[#allocation5 + $0x8] sm:$0xff]
    %v56 = vld [vmem:[#allocation5 + $0x10] sm:$0xff]
    %v57 = vld [vmem:[#allocation5 + $0x18] sm:$0xff]
    %v58 = vperm.slane %v46, 0
    %vm59 = vcmask 261120
    %v61 = vsel %vm59, %v44, 0
    %v64 = vsel %vm59, %v45, 0
    %66 = vmatpush.msra.mxu0 0.0
    %67 = vmatpush.msra.mxu0 0.0
    %68 = vmatpush.msra.mxu0 0.0
    %69 = vmatpush.msra.mxu0 0.0
    %70 = vmatpush.msra.mxu0 0.0
    %71 = vmatpush.msra.mxu0 0.0
    %72 = vmatpush.msra.mxu0 0.0
    %73 = vmatpush.msra.mxu0 0.0
    %74 = vmatpush.msra.mxu0 0.0
    %75 = vmatpush.msra.mxu0 0.0
    %76 = vmatpush.msra.mxu0 0.0
    %77 = vmatpush.msra.mxu0 0.0
    %78 = vmatpush.msra.mxu0 %v57
    %79 = vmatpush.msra.mxu0 %v56
    %80 = vmatpush.msra.mxu0 %v55
    %81 = vmatpush.msra.mxu0 %v54
    %82 = vmatmul.f32.gmra.mxu0 %v61
    %v83 = vpop.f32.mrf.mxu0
    %v84 = vadd.f32 %v58, %v83
    %85 = vmatmul.f32.gmra.mxu0 %v64
    %v86 = vpop.f32.mrf.mxu0
    %v87 = vadd.f32 %v58, %v86
    %88 = vdwg.mxu0
    %91 = vrot.lane.b32.xlu0 %v84, 120
    %v92 = vpop.permute.xlu0 %91
    %93 = vrot.lane.b32.xlu0 %v87, 120
    %v94 = vpop.permute.xlu0 %93
    %95 = vrot.lane.b32.xlu0 %v84, 112
    %v96 = vpop.permute.xlu0 %95
    %97 = vrot.lane.b32.xlu0 %v87, 112
    %v98 = vpop.permute.xlu0 %97
    %99 = vrot.lane.b32.xlu0 %v84, 104
    %v100 = vpop.permute.xlu0 %99
    %101 = vrot.lane.b32.xlu0 %v87, 104
    %v102 = vpop.permute.xlu0 %101
    %v103 = vld [vmem:[#allocation5 + $0xa0] sm:$0xff]
    %v104 = vld [vmem:[#allocation5 + $0xa8] sm:$0xff]
    %v105 = vld [vmem:[#allocation5 + $0xb0] sm:$0xff]
    %v106 = vld [vmem:[#allocation5 + $0xb8] sm:$0xff]
    %v107 = vld [vmem:[#allocation5 + $0xc0] sm:$0xff]
    %v108 = vld [vmem:[#allocation5 + $0xc8] sm:$0xff]
    %v109 = vld [vmem:[#allocation5 + $0xd0] sm:$0xff]
    %v110 = vld [vmem:[#allocation5 + $0xd8] sm:$0xff]
    %111 = vrot.lane.b32.xlu0 %v84, 96
    %v112 = vpop.permute.xlu0 %111
    %113 = vrot.lane.b32.xlu0 %v87, 96
    %v114 = vpop.permute.xlu0 %113
    %115 = vrot.lane.b32.xlu0 %v92, 96
    %v116 = vpop.permute.xlu0 %115
    %117 = vrot.lane.b32.xlu0 %v94, 96
    %v118 = vpop.permute.xlu0 %117
    %119 = vrot.lane.b32.xlu0 %v96, 96
    %v120 = vpop.permute.xlu0 %119
    %121 = vrot.lane.b32.xlu0 %v98, 96
    %v122 = vpop.permute.xlu0 %121
    %123 = vrot.lane.b32.xlu0 %v100, 96
    %v124 = vpop.permute.xlu0 %123
    %125 = vrot.lane.b32.xlu0 %v102, 96
    %v126 = vpop.permute.xlu0 %125
    %vm127 = vcmask 64512
    %v128 = vsel %vm127, %v84, 0
    %v130 = vsel %vm127, %v87, 0
    %v132 = vsel %vm127, %v92, 0
    %v134 = vsel %vm127, %v94, 0
    %v136 = vsel %vm127, %v96, 0
    %v138 = vsel %vm127, %v98, 0
    %v140 = vsel %vm127, %v100, 0
    %v142 = vsel %vm127, %v102, 0
    %v144 = vsel %vm127, %v112, 0
    %v146 = vsel %vm127, %v114, 0
    %v148 = vsel %vm127, %v116, 0
    %v150 = vsel %vm127, %v118, 0
    %v152 = vsel %vm127, %v120, 0
    %v154 = vsel %vm127, %v122, 0
    %v156 = vsel %vm127, %v124, 0
    %v158 = vsel %vm127, %v126, 0
    %160 = vmatpush.xpose.msra.mxu0 0.0
    %161 = vmatpush.xpose.msra.mxu0 0.0
    %162 = vmatpush.xpose.msra.mxu0 0.0
    %163 = vmatpush.xpose.msra.mxu0 0.0
    %164 = vmatpush.xpose.msra.mxu0 0.0
    %165 = vmatpush.xpose.msra.mxu0 0.0
    %166 = vmatpush.xpose.msra.mxu0 0.0
    %167 = vmatpush.xpose.msra.mxu0 0.0
    %168 = vmatpush.xpose.msra.mxu0 %v158
    %169 = vmatpush.xpose.msra.mxu0 %v156
    %170 = vmatpush.xpose.msra.mxu0 %v154
    %171 = vmatpush.xpose.msra.mxu0 %v152
    %172 = vmatpush.xpose.msra.mxu0 %v150
    %173 = vmatpush.xpose.msra.mxu0 %v148
    %174 = vmatpush.xpose.msra.mxu0 %v146
    %175 = vmatpush.xpose.msra.mxu0 %v144
    %176 = vmatmul.f32.gmra.mxu0 %v128
    %v177 = vpop.f32.mrf.mxu0
    %v178 = vadd.f32 %v103, %v177
    %179 = vmatmul.f32.gmra.mxu0 %v130
    %v180 = vpop.f32.mrf.mxu0
    %v181 = vadd.f32 %v104, %v180
    %182 = vmatmul.f32.gmra.mxu0 %v132
    %v183 = vpop.f32.mrf.mxu0
    %v184 = vadd.f32 %v105, %v183
    %185 = vmatmul.f32.gmra.mxu0 %v134
    %v186 = vpop.f32.mrf.mxu0
    %v187 = vadd.f32 %v106, %v186
    %188 = vmatmul.f32.gmra.mxu0 %v136
    %v189 = vpop.f32.mrf.mxu0
    %v190 = vadd.f32 %v107, %v189
    %191 = vmatmul.f32.gmra.mxu0 %v138
    %v192 = vpop.f32.mrf.mxu0
    %v193 = vadd.f32 %v108, %v192
    %194 = vmatmul.f32.gmra.mxu0 %v140
    %v195 = vpop.f32.mrf.mxu0
    %v196 = vadd.f32 %v109, %v195
    %197 = vmatmul.f32.gmra.mxu0 %v142
    %v198 = vpop.f32.mrf.mxu0
    %v199 = vadd.f32 %v110, %v198
    %200 = vdwg.mxu0
    %vm201 = vcmask 523264
    %v202 = vsel %vm201, %v178, -inf
    %203 = vmax.xlane.f32.xlu0 %v202
    %v204 = vpop.xlane.xlu0 %203
    %v205 = vsel %vm201, %v181, -inf
    %206 = vmax.xlane.f32.xlu0 %v205
    %v207 = vpop.xlane.xlu0 %206
    %v208 = vsel %vm201, %v184, -inf
    %209 = vmax.xlane.f32.xlu0 %v208
    %v210 = vpop.xlane.xlu0 %209
    %v211 = vsel %vm201, %v187, -inf
    %212 = vmax.xlane.f32.xlu0 %v211
    %v213 = vpop.xlane.xlu0 %212
    %v214 = vsel %vm201, %v190, -inf
    %215 = vmax.xlane.f32.xlu0 %v214
    %v216 = vpop.xlane.xlu0 %215
    %v217 = vsel %vm201, %v193, -inf
    %218 = vmax.xlane.f32.xlu0 %v217
    %v219 = vpop.xlane.xlu0 %218
    %v220 = vsel %vm201, %v196, -inf
    %221 = vmax.xlane.f32.xlu0 %v220
    %v222 = vpop.xlane.xlu0 %221
    %v223 = vsel %vm201, %v199, -inf
    %224 = vmax.xlane.f32.xlu0 %v223
    %v225 = vpop.xlane.xlu0 %224
    %v226 = vsub.f32 %v178, %v204
    %v227 = vsub.f32 %v181, %v207
    %v228 = vsub.f32 %v184, %v210
    %v229 = vsub.f32 %v187, %v213
    %v230 = vsub.f32 %v190, %v216
    %v231 = vsub.f32 %v193, %v219
    %v232 = vsub.f32 %v196, %v222
    %v233 = vsub.f32 %v199, %v225
    %v234 = vmul.f32 %v226, 1.442695
    %v235 = vpow.pop %v234
    %v236 = vmul.f32 %v227, 1.442695
    %v237 = vpow.pop %v236
    %v238 = vmul.f32 %v228, 1.442695
    %v239 = vpow.pop %v238
    %v240 = vmul.f32 %v229, 1.442695
    %v241 = vpow.pop %v240
    %v242 = vmul.f32 %v230, 1.442695
    %v243 = vpow.pop %v242
    %v244 = vmul.f32 %v231, 1.442695
    %v245 = vpow.pop %v244
    %v246 = vmul.f32 %v232, 1.442695
    %v247 = vpow.pop %v246
    %v248 = vmul.f32 %v233, 1.442695
    %v249 = vpow.pop %v248
    %v250 = vsel %vm201, %v235, 0.0
    %251 = vadd.xlane.f32.xlu0 %v250
    %v252 = vpop.xlane.xlu0 %251
    %v253 = vsel %vm201, %v237, 0.0
    %254 = vadd.xlane.f32.xlu0 %v253
    %v255 = vpop.xlane.xlu0 %254
    %v256 = vsel %vm201, %v239, 0.0
    %257 = vadd.xlane.f32.xlu0 %v256
    %v258 = vpop.xlane.xlu0 %257
    %v259 = vsel %vm201, %v241, 0.0
    %260 = vadd.xlane.f32.xlu0 %v259
    %v261 = vpop.xlane.xlu0 %260
    %v262 = vsel %vm201, %v243, 0.0
    %263 = vadd.xlane.f32.xlu0 %v262
    %v264 = vpop.xlane.xlu0 %263
    %v265 = vsel %vm201, %v245, 0.0
    %266 = vadd.xlane.f32.xlu0 %v265
    %v267 = vpop.xlane.xlu0 %266
    %v268 = vsel %vm201, %v247, 0.0
    %269 = vadd.xlane.f32.xlu0 %v268
    %v270 = vpop.xlane.xlu0 %269
    %v271 = vsel %vm201, %v249, 0.0
    %272 = vadd.xlane.f32.xlu0 %v271
    %v273 = vpop.xlane.xlu0 %272
    %v274 = vrcp.pop %v252
    %v275 = vrcp.pop %v255
    %v276 = vrcp.pop %v258
    %v277 = vrcp.pop %v261
    %v278 = vrcp.pop %v264
    %v279 = vrcp.pop %v267
    %v280 = vrcp.pop %v270
    %v281 = vrcp.pop %v273
    %v282 = vmul.f32 %v235, %v274
    %v283 = vmul.f32 %v237, %v275
    %v284 = vmul.f32 %v239, %v276
    %v285 = vmul.f32 %v241, %v277
    %v286 = vmul.f32 %v243, %v278
    %v287 = vmul.f32 %v245, %v279
    %v288 = vmul.f32 %v247, %v280
    %v289 = vmul.f32 %v249, %v281
    %290 = vrot.lane.b32.xlu0 %v84, 64
    %v291 = vpop.permute.xlu0 %290
    %292 = vrot.lane.b32.xlu0 %v87, 64
    %v293 = vpop.permute.xlu0 %292
    %294 = vrot.lane.b32.xlu0 %v92, 64
    %v295 = vpop.permute.xlu0 %294
    %296 = vrot.lane.b32.xlu0 %v94, 64
    %v297 = vpop.permute.xlu0 %296
    %298 = vrot.lane.b32.xlu0 %v96, 64
    %v299 = vpop.permute.xlu0 %298
    %300 = vrot.lane.b32.xlu0 %v98, 64
    %v301 = vpop.permute.xlu0 %300
    %302 = vrot.lane.b32.xlu0 %v100, 64
    %v303 = vpop.permute.xlu0 %302
    %304 = vrot.lane.b32.xlu0 %v102, 64
    %v305 = vpop.permute.xlu0 %304
    %v315 = vsel %vm201, %v282, 0
    %v318 = vsel %vm201, %v283, 0
    %v321 = vsel %vm201, %v284, 0
    %v324 = vsel %vm201, %v285, 0
    %v327 = vsel %vm201, %v286, 0
    %v330 = vsel %vm201, %v287, 0
    %v333 = vsel %vm201, %v288, 0
    %v336 = vsel %vm201, %v289, 0
    %338 = vmatpush.msra.mxu0 0.0
    %339 = vmatpush.msra.mxu0 0.0
    %340 = vmatpush.msra.mxu0 0.0
    %341 = vmatpush.msra.mxu0 0.0
    %342 = vmatpush.msra.mxu0 0.0
    %343 = vmatpush.msra.mxu0 0.0
    %344 = vmatpush.msra.mxu0 0.0
    %345 = vmatpush.msra.mxu0 0.0
    %346 = vmatpush.msra.mxu0 %v305
    %347 = vmatpush.msra.mxu0 %v303
    %348 = vmatpush.msra.mxu0 %v301
    %349 = vmatpush.msra.mxu0 %v299
    %350 = vmatpush.msra.mxu0 %v297
    %351 = vmatpush.msra.mxu0 %v295
    %352 = vmatpush.msra.mxu0 %v293
    %353 = vmatpush.msra.mxu0 %v291
    %354 = vmatmul.f32.gmra.mxu0 %v315
    %v355 = vpop.f32.mrf.mxu0
    %v356 = vadd.f32 0.0, %v355
    %357 = vmatmul.f32.gmra.mxu0 %v318
    %v358 = vpop.f32.mrf.mxu0
    %v359 = vadd.f32 0.0, %v358
    %360 = vmatmul.f32.gmra.mxu0 %v321
    %v361 = vpop.f32.mrf.mxu0
    %v362 = vadd.f32 0.0, %v361
    %363 = vmatmul.f32.gmra.mxu0 %v324
    %v364 = vpop.f32.mrf.mxu0
    %v365 = vadd.f32 0.0, %v364
    %366 = vmatmul.f32.gmra.mxu0 %v327
    %v367 = vpop.f32.mrf.mxu0
    %v368 = vadd.f32 0.0, %v367
    %369 = vmatmul.f32.gmra.mxu0 %v330
    %v370 = vpop.f32.mrf.mxu0
    %v371 = vadd.f32 0.0, %v370
    %372 = vmatmul.f32.gmra.mxu0 %v333
    %v373 = vpop.f32.mrf.mxu0
    %v374 = vadd.f32 0.0, %v373
    %375 = vmatmul.f32.gmra.mxu0 %v336
    %v376 = vpop.f32.mrf.mxu0
    %v377 = vadd.f32 0.0, %v376
    %378 = vdwg.mxu0
    %381 = vrot.lane.b32.xlu0 %v362, 8
    %v382 = vpop.permute.xlu0 %381
    %383 = vrot.lane.b32.xlu0 %v365, 8
    %v384 = vpop.permute.xlu0 %383
    %389 = vrot.lane.b32.xlu0 %v368, 16
    %v390 = vpop.permute.xlu0 %389
    %391 = vrot.lane.b32.xlu0 %v371, 16
    %v392 = vpop.permute.xlu0 %391
    %397 = vrot.lane.b32.xlu0 %v374, 24
    %v398 = vpop.permute.xlu0 %397
    %399 = vrot.lane.b32.xlu0 %v377, 24
    %v400 = vpop.permute.xlu0 %399
    %v403 = vsel %vm127, %v356, %v382
    %v404 = vsel %vm127, %v359, %v384
    %vm405 = vcmask 130048
    %v406 = vsel %vm405, %v403, %v390
    %v407 = vsel %vm405, %v404, %v392
    %vm408 = vcmask 195584
    %v409 = vsel %vm408, %v406, %v398
    %v410 = vsel %vm408, %v407, %v400
    %v411 = vld [vmem:[#allocation5 + $0x20] sm:$0xff]
    %v412 = vld [vmem:[#allocation5 + $0x28] sm:$0xff]
    %v413 = vld [vmem:[#allocation5 + $0x30] sm:$0xff]
    %v414 = vld [vmem:[#allocation5 + $0x38] sm:$0xff]
    %v415 = vperm.slane %v47, 0
    %v417 = vsel %vm59, %v409, 0
    %v420 = vsel %vm59, %v410, 0
    %422 = vmatpush.msra.mxu0 0.0
    %423 = vmatpush.msra.mxu0 0.0
    %424 = vmatpush.msra.mxu0 0.0
    %425 = vmatpush.msra.mxu0 0.0
    %426 = vmatpush.msra.mxu0 0.0
    %427 = vmatpush.msra.mxu0 0.0
    %428 = vmatpush.msra.mxu0 0.0
    %429 = vmatpush.msra.mxu0 0.0
    %430 = vmatpush.msra.mxu0 0.0
    %431 = vmatpush.msra.mxu0 0.0
    %432 = vmatpush.msra.mxu0 0.0
    %433 = vmatpush.msra.mxu0 0.0
    %434 = vmatpush.msra.mxu0 %v414
    %435 = vmatpush.msra.mxu0 %v413
    %436 = vmatpush.msra.mxu0 %v412
    %437 = vmatpush.msra.mxu0 %v411
    %438 = vmatmul.f32.gmra.mxu0 %v417
    %v439 = vpop.f32.mrf.mxu0
    %v440 = vadd.f32 %v415, %v439
    %441 = vmatmul.f32.gmra.mxu0 %v420
    %v442 = vpop.f32.mrf.mxu0
    %v443 = vadd.f32 %v415, %v442
    %444 = vdwg.mxu0
    %v445 = vadd.f32 %v44, %v440
    %v446 = vadd.f32 %v45, %v443
    %v447 = vsel %vm59, %v445, 0.0
    %448 = vadd.xlane.f32.xlu0 %v447
    %v449 = vpop.xlane.xlu0 %448
    %v450 = vsel %vm59, %v446, 0.0
    %451 = vadd.xlane.f32.xlu0 %v450
    %v452 = vpop.xlane.xlu0 %451
    %v453 = vrcp.pop 32.0
    %v454 = vmul.f32 32.0, %v453
    %v455 = vsub.f32 1.0, %v454
    %v456 = vmul.f32 %v453, %v455
    %v457 = vadd.f32 %v453, %v456
    %vm458 = vweird.f32 %v453
    %v459 = vsel %vm458, %v453, %v457
    %v460 = vmul.f32 %v449, %v459
    %v461 = vmul.f32 %v452, %v459
    %v462 = vsub.f32 %v445, %v460
    %v463 = vsub.f32 %v446, %v461
    %v464 = vmul.f32 %v462, %v462
    %v465 = vmul.f32 %v463, %v463
    %v466 = vsel %vm59, %v464, 0.0
    %467 = vadd.xlane.f32.xlu0 %v466
    %v468 = vpop.xlane.xlu0 %467
    %v469 = vsel %vm59, %v465, 0.0
    %470 = vadd.xlane.f32.xlu0 %v469
    %v471 = vpop.xlane.xlu0 %470
    %v472 = vmul.f32 %v468, %v459
    %v473 = vmul.f32 %v471, %v459
    %v474 = vadd.f32 %v472, 1e-06
    %v475 = vadd.f32 %v473, 1e-06
    %v476 = vrsqrt.pop %v474
    %v477 = vmul.f32 %v476, %v474
    %v478 = vmul.f32 %v477, %v476
    %v479 = vmul.f32 0.5, %v478
    %v480 = vsub.f32 1.5, %v479
    %v481 = vmul.f32 %v476, %v480
    %vm482 = vweird.f32 %v474
    %vm483 = vweird.f32 %v476
    %vm484 = vmor %vm482, %vm483
    %v485 = vsel %vm484, %v476, %v481
    %v486 = vrsqrt.pop %v475
    %v487 = vmul.f32 %v486, %v475
    %v488 = vmul.f32 %v487, %v486
    %v489 = vmul.f32 0.5, %v488
    %v490 = vsub.f32 1.5, %v489
    %v491 = vmul.f32 %v486, %v490
    %vm492 = vweird.f32 %v475
    %vm493 = vweird.f32 %v486
    %vm494 = vmor %vm492, %vm493
    %v495 = vsel %vm494, %v486, %v491
    %v496 = vmul.f32 %v462, %v485
    %v497 = vmul.f32 %v463, %v495
    %v498 = vperm.slane %v48, 0
    %v499 = vmul.f32 %v496, %v498
    %v500 = vmul.f32 %v497, %v498
    %v501 = vperm.slane %v49, 0
    %v502 = vadd.f32 %v499, %v501
    %v503 = vadd.f32 %v500, %v501
    %v504 = vld [vmem:[#allocation5 + $0x40] sm:$0xff]
    %v505 = vld [vmem:[#allocation5 + $0x48] sm:$0xff]
    %v506 = vld [vmem:[#allocation5 + $0x50] sm:$0xff]
    %v507 = vld [vmem:[#allocation5 + $0x58] sm:$0xff]
    %v508 = vperm.slane %v50, 0
    %v510 = vsel %vm59, %v502, 0
    %v513 = vsel %vm59, %v503, 0
    %515 = vmatpush.msra.mxu0 0.0
    %516 = vmatpush.msra.mxu0 0.0
    %517 = vmatpush.msra.mxu0 0.0
    %518 = vmatpush.msra.mxu0 0.0
    %519 = vmatpush.msra.mxu0 0.0
    %520 = vmatpush.msra.mxu0 0.0
    %521 = vmatpush.msra.mxu0 0.0
    %522 = vmatpush.msra.mxu0 0.0
    %523 = vmatpush.msra.mxu0 0.0
    %524 = vmatpush.msra.mxu0 0.0
    %525 = vmatpush.msra.mxu0 0.0
    %526 = vmatpush.msra.mxu0 0.0
    %527 = vmatpush.msra.mxu0 %v507
    %528 = vmatpush.msra.mxu0 %v506
    %529 = vmatpush.msra.mxu0 %v505
    %530 = vmatpush.msra.mxu0 %v504
    %531 = vmatmul.f32.gmra.mxu0 %v510
    %v532 = vpop.f32.mrf.mxu0
    %v533 = vadd.f32 %v508, %v532
    %534 = vmatmul.f32.gmra.mxu0 %v513
    %v535 = vpop.f32.mrf.mxu0
    %v536 = vadd.f32 %v508, %v535
    %537 = vdwg.mxu0
    %v538 = vmax.f32 %v533, 0.0
    %v539 = vmax.f32 %v536, 0.0
    %v540 = vld [vmem:[#allocation5 + $0x60] sm:$0xff]
    %v541 = vld [vmem:[#allocation5 + $0x68] sm:$0xff]
    %v542 = vld [vmem:[#allocation5 + $0x70] sm:$0xff]
    %v543 = vld [vmem:[#allocation5 + $0x78] sm:$0xff]
    %v544 = vld [vmem:[#allocation5 + $0x80] sm:$0xff]
    %v545 = vld [vmem:[#allocation5 + $0x88] sm:$0xff]
    %v546 = vld [vmem:[#allocation5 + $0x90] sm:$0xff]
    %v547 = vld [vmem:[#allocation5 + $0x98] sm:$0xff]
    %v548 = vperm.slane %v51, 0
    %v550 = vsel %vm201, %v538, 0
    %v553 = vsel %vm201, %v539, 0
    %555 = vmatpush.msra.mxu0 0.0
    %556 = vmatpush.msra.mxu0 0.0
    %557 = vmatpush.msra.mxu0 0.0
    %558 = vmatpush.msra.mxu0 0.0
    %559 = vmatpush.msra.mxu0 0.0
    %560 = vmatpush.msra.mxu0 0.0
    %561 = vmatpush.msra.mxu0 0.0
    %562 = vmatpush.msra.mxu0 0.0
    %563 = vmatpush.msra.mxu0 %v547
    %564 = vmatpush.msra.mxu0 %v546
    %565 = vmatpush.msra.mxu0 %v545
    %566 = vmatpush.msra.mxu0 %v544
    %567 = vmatpush.msra.mxu0 %v543
    %568 = vmatpush.msra.mxu0 %v542
    %569 = vmatpush.msra.mxu0 %v541
    %570 = vmatpush.msra.mxu0 %v540
    %571 = vmatmul.f32.gmra.mxu0 %v550
    %v572 = vpop.f32.mrf.mxu0
    %v573 = vadd.f32 %v548, %v572
    %574 = vmatmul.f32.gmra.mxu0 %v553
    %v575 = vpop.f32.mrf.mxu0
    %v576 = vadd.f32 %v548, %v575
    %577 = vdwg.mxu0
    %v578 = vadd.f32 %v502, %v573
    %v579 = vadd.f32 %v503, %v576
    %v580 = vsel %vm59, %v578, 0.0
    %581 = vadd.xlane.f32.xlu0 %v580
    %v582 = vpop.xlane.xlu0 %581
    %v583 = vsel %vm59, %v579, 0.0
    %584 = vadd.xlane.f32.xlu0 %v583
    %v585 = vpop.xlane.xlu0 %584
    %v586 = vmul.f32 %v582, %v459
    %v587 = vmul.f32 %v585, %v459
    %v588 = vsub.f32 %v578, %v586
    %v589 = vsub.f32 %v579, %v587
    %v590 = vmul.f32 %v588, %v588
    %v591 = vmul.f32 %v589, %v589
    %v592 = vsel %vm59, %v590, 0.0
    %593 = vadd.xlane.f32.xlu0 %v592
    %v594 = vpop.xlane.xlu0 %593
    %v595 = vsel %vm59, %v591, 0.0
    %596 = vadd.xlane.f32.xlu0 %v595
    %v597 = vpop.xlane.xlu0 %596
    %v598 = vmul.f32 %v594, %v459
    %v599 = vmul.f32 %v597, %v459
    %v600 = vadd.f32 %v598, 1e-06
    %v601 = vadd.f32 %v599, 1e-06
    %v602 = vrsqrt.pop %v600
    %v603 = vmul.f32 %v602, %v600
    %v604 = vmul.f32 %v603, %v602
    %v605 = vmul.f32 0.5, %v604
    %v606 = vsub.f32 1.5, %v605
    %v607 = vmul.f32 %v602, %v606
    %vm608 = vweird.f32 %v600
    %vm609 = vweird.f32 %v602
    %vm610 = vmor %vm608, %vm609
    %v611 = vsel %vm610, %v602, %v607
    %v612 = vrsqrt.pop %v601
    %v613 = vmul.f32 %v612, %v601
    %v614 = vmul.f32 %v613, %v612
    %v615 = vmul.f32 0.5, %v614
    %v616 = vsub.f32 1.5, %v615
    %v617 = vmul.f32 %v612, %v616
    %vm618 = vweird.f32 %v601
    %vm619 = vweird.f32 %v612
    %vm620 = vmor %vm618, %vm619
    %v621 = vsel %vm620, %v612, %v617
    %v622 = vmul.f32 %v588, %v611
    %v623 = vmul.f32 %v589, %v621
    %v624 = vperm.slane %v52, 0
    %v625 = vmul.f32 %v622, %v624
    %v626 = vmul.f32 %v623, %v624
    %v627 = vperm.slane %v53, 0
    %v628 = vadd.f32 %v625, %v627
    %v629 = vadd.f32 %v626, %v627
    %630 = vrot.lane.b32.xlu0 %v284, 112
    %v631 = vpop.permute.xlu0 %630
    %632 = vrot.lane.b32.xlu0 %v285, 112
    %v633 = vpop.permute.xlu0 %632
    %v636 = vadd.f32 %v282, %v631
    %v637 = vadd.f32 %v283, %v633
    %638 = vrot.lane.b32.xlu0 %v286, 96
    %v639 = vpop.permute.xlu0 %638
    %640 = vrot.lane.b32.xlu0 %v287, 96
    %v641 = vpop.permute.xlu0 %640
    %v644 = vadd.f32 %v636, %v639
    %v645 = vadd.f32 %v637, %v641
    %646 = vrot.lane.b32.xlu0 %v288, 80
    %v647 = vpop.permute.xlu0 %646
    %648 = vrot.lane.b32.xlu0 %v289, 80
    %v649 = vpop.permute.xlu0 %648
    %v652 = vadd.f32 %v644, %v647
    %v653 = vadd.f32 %v645, %v649
    %v654 = vmul.f32 %v652, 0.25
    %v655 = vmul.f32 %v653, 0.25
    %658 = vrot.lane.b32.xlu0 %v654, 32
    %v659 = vpop.permute.xlu0 %658
    %660 = vrot.lane.b32.xlu0 %v655, 32
    %v661 = vpop.permute.xlu0 %660
    %v664 = vsel %vm59, %v628, %v659
    %v665 = vsel %vm59, %v629, %v661
    %vm666 = vcmask 392192
    %v667 = vsel %vm666, %v664, 0.0
    %v668 = vsel %vm666, %v665, 0.0
    %669 = vst [vmem:[#allocation7] sm:$0xff] %v667
    %670 = vst [vmem:[#allocation7 + $0x8] sm:$0xff] %v668
    // Predicated region
    $region18: #{tpu_custom_call.1} parent=1 // pred_check
      _
    $region19: #{tpu_custom_call.1} parent=1 // pred_check_branch
      %672 = sbr.rel (0) target = $region21
    $region20: #{tpu_custom_call.1} parent=1 // pred_region
      %674 = vsyncadd [#allocation4], 0
      %s675 = sshll.u32 [#allocation7], 4
      %s676 = int_to_ptr.vmem [resolvable:$true] %s675
      %s677 = sshll.u32 %s2, 4
      %s678 = int_to_ptr.hbm [resolvable:$true] %s677
      %683 = dma.vmem_to_hbm [thread:$0]  %s676, 256, %s678, [#allocation4], 128, 128, 8
    $region21: #{tpu_custom_call.1} parent=1 // pred_fallthru
      _
    // Predicated region
    $region22: #{tpu_custom_call.1} parent=1 // pred_check
      _
    $region23: #{tpu_custom_call.1} parent=1 // pred_check_branch
      %685 = sbr.rel (0) target = $region25
    $region24: #{tpu_custom_call.1} parent=1 // pred_region
      %687 = dma.done [#allocation4], 256
    $region25: #{tpu_custom_call.1} parent=1 // pred_fallthru
      _
    %688 = vsyncpa [#allocation3], 1
    %689 = vsyncpa [#allocation6], 1
    %690 = vsyncpa [#allocation4], 1

</llo_original>
